<compile_context>
chip_gen: v7x
topology: tpu7x:2x2x1
jax: 0.10.0
libtpu: 0.0.40
codegen_flags: <defaults>
</compile_context>

<pallas_src>
import jax
import jax.numpy as jnp
from jax import lax
from jax.experimental import pallas as pl
from jax.experimental.pallas import tpu as pltpu


# --------------------------------------------------------------------------
# hardware-aware sizing helpers
# --------------------------------------------------------------------------
def _vmem_capacity_bytes():
    """Physical VMEM per TensorCore; conservative default if the query fails."""
    try:
        info = pltpu.get_tpu_info()
        cap = getattr(info, "vmem_capacity_bytes", None)
        if cap:
            return int(cap)
    except Exception:
        pass
    return 64 * 1024 * 1024   # v7x per-TC size: safe lower bound everywhere


def _vmem_limit(cap, live_bytes):
    """Explicit scoped-VMEM limit: what we need + headroom, capped by hardware."""
    return int(max(32 << 20, min(int(cap * 0.9), live_bytes + (32 << 20))))


def _pick_batch_tile(bs, c, L, itemsize, n_streams, budget_bytes):
    """Pick the batch tile so that
       (a) 2x double-buffered streaming blocks fit the generation-aware budget,
       (b) there are >= ~4 grid steps (even count preferred -> v7x megacore),
       (c) each tile stays >= ~0.5 MiB (per-step overhead ~0.35 us).
    Returns 0 if even one batch row does not fit (caller uses two-pass path)."""
    row_bytes = c * L * itemsize
    per_row_live = 2 * n_streams * row_bytes          # double-buffered blocks
    tb_budget = budget_bytes // per_row_live
    if tb_budget < 1:
        return 0
    min_rows = max(1, (512 * 1024) // row_bytes)
    tb = int(min(tb_budget, max(min_rows, pl.cdiv(bs, 4)), bs))
    tb = max(tb, 1)
    steps = pl.cdiv(bs, tb)
    if steps > 1 and steps % 2 == 1:                  # prefer an even step count
        tb_even = max(1, pl.cdiv(bs, steps + 1))
        if pl.cdiv(bs, tb_even) % 2 == 0:
            tb = tb_even
    return int(tb)


# --------------------------------------------------------------------------
# single-pass kernels: whole length axis resident per batch tile
# --------------------------------------------------------------------------
def _se_excitation(x_ref, w1_ref, w2_ref):
    """Returns the (tb, c) f32 sigmoid gate for the current batch tile."""
    # squeeze: f32 mean over the length (lane) axis.
    # TODO(synk): review suggested moving this reduction onto the idle MXU
    # (ones-vector matmul); deferred because the (tb*c,1)->(tb,c) result
    # relayout is a lowering risk and the XLU reduce is not what bounds this
    # bandwidth-limited kernel.
    y = jnp.mean(x_ref[...].astype(jnp.float32), axis=-1)              # (tb, c)

    # excitation MLP in f32.  Contract directly over the in-features axis of
    # the torch (out,in) weight layout -> no in-kernel transposes.
    z = lax.dot_general(y, w1_ref[...].astype(jnp.float32),
                        dimension_numbers=(((1,), (1,)), ((), ())),
                        preferred_element_type=jnp.float32)
    z = jnp.maximum(z, 0.0)
    s = lax.dot_general(z, w2_ref[...].astype(jnp.float32),
                        dimension_numbers=(((1,), (1,)), ((), ())),
                        preferred_element_type=jnp.float32)
    return jax.nn.sigmoid(s)                                           # (tb, c)


def _se_gate_only_kernel(x_ref, w1_ref, w2_ref, out_ref):
    s = _se_excitation(x_ref, w1_ref, w2_ref)
    xt = x_ref[...]                                    # streaming dtype (f32/bf16)
    out_ref[...] = (xt * s.astype(xt.dtype)[:, :, None]).astype(out_ref.dtype)


def _se_fused_kernel(x_ref, id_ref, w1_ref, w2_ref, out_ref):
    # out = x * gate + identity, all in the streaming dtype (bf16 stays bf16 on
    # v6e/v7x; Mosaic upconverts transparently on v5e).
    s = _se_excitation(x_ref, w1_ref, w2_ref)
    xt = x_ref[...]
    out_ref[...] = (xt * s.astype(xt.dtype)[:, :, None]
                    + id_ref[...]).astype(out_ref.dtype)


def _se_apply(x, identity, w1, w2, *, batch_tile=None):
    bs, c, L = x.shape
    h = w1.shape[0]
    itemsize = x.dtype.itemsize
    fused = identity is not None
    n_streams = 3 if fused else 2                      # big (bs,c,L) arrays / step

    cap = _vmem_capacity_bytes()
    budget = int(cap * 0.6)                            # generation-aware tile budget

    tb = batch_tile if batch_tile is not None else _pick_batch_tile(
        bs, c, L, itemsize, n_streams, budget)
    if tb < 1:
        # Even one batch row does not fit (very long L): two-pass fallback.
        return _se_two_pass(x, identity, w1, w2, budget_bytes=budget, vmem_cap=cap)
    tb = int(min(tb, bs))

    grid = (pl.cdiv(bs, tb),)
    live = (2 * n_streams * tb * c * L * itemsize
            + 2 * (w1.size * w1.dtype.itemsize + w2.size * w2.dtype.itemsize))

    cost = pl.CostEstimate(
        flops=int(2 * bs * c * L + 4 * bs * c * h
                  + (2 if fused else 1) * bs * c * L),
        transcendentals=int(bs * c),
        bytes_accessed=int(n_streams * bs * c * L * itemsize
                           + (w1.size + w2.size) * w1.dtype.itemsize),
    )

    big = pl.BlockSpec((tb, c, L), lambda i: (i, 0, 0))
    in_specs = [big] + ([big] if fused else []) + [
        pl.BlockSpec((h, c), lambda i: (0, 0)),
        pl.BlockSpec((c, h), lambda i: (0, 0)),
    ]
    operands = (x, identity, w1, w2) if fused else (x, w1, w2)

    return pl.pallas_call(
        _se_fused_kernel if fused else _se_gate_only_kernel,
        out_shape=jax.ShapeDtypeStruct((bs, c, L), x.dtype),
        grid_spec=pltpu.PrefetchScalarGridSpec(
            num_scalar_prefetch=0,
            grid=grid,
            in_specs=in_specs,
            out_specs=big,
        ),
        compiler_params=pltpu.CompilerParams(
            dimension_semantics=("parallel",),
            vmem_limit_bytes=_vmem_limit(cap, live),
        ),
        cost_estimate=cost,
    )(*operands)


def se_residual_block(x, identity, w1, w2, *, batch_tile=None):
    """Fused BasicBlock tail: x * SE_gate(x) + identity.  x, identity: (bs,c,L)."""
    assert identity.shape == x.shape and identity.dtype == x.dtype
    return _se_apply(x, identity, w1, w2, batch_tile=batch_tile)


def se_block(x, w1, w2, *, batch_tile=None):
    """Plain SE_Block semantics: x * SE_gate(x)."""
    return _se_apply(x, None, w1, w2, batch_tile=batch_tile)


# --------------------------------------------------------------------------
# two-pass fallback for very long L (one (1,c,L) block would not fit VMEM)
# --------------------------------------------------------------------------
def _se_two_pass(x, identity, w1, w2, *, budget_bytes, vmem_cap):
    """Pass 1: L-gridded reduction producing the gate (lane-replicated so pass 2
    is pure elementwise).  Pass 2: (batch,L)-gridded rescale (+ residual add).
    Costs one extra HBM read of x vs the single-pass kernel."""
    bs, c, L = x.shape
    h = w1.shape[0]
    itemsize = x.dtype.itemsize
    fused = identity is not None
    assert L >= 128, "two-pass fallback expects a long length axis"

    def pick(n_streams):
        col_bytes = 2 * n_streams * c * itemsize            # per L column (tb=1)
        tl_budget = (budget_bytes // col_bytes) // 128 * 128
        tl_max = L if L % 128 == 0 else (L // 128) * 128     # multiples of 128
        tl = int(max(128, min(tl_budget, tl_max)))
        tb = int(max(1, min(bs, budget_bytes // (2 * n_streams * c * tl * itemsize))))
        return tb, tl

    # ---- pass 1: gate s = sigmoid(relu(mean_L(x) @ W1.T) @ W2.T) ------------
    tb_g, tl_g = pick(1)

    def gate_kernel(x_ref, w1_ref, w2_ref, s_ref, acc_ref):
        li = pl.program_id(1)

        @pl.when(li == 0)
        def _():
            acc_ref[...] = jnp.zeros_like(acc_ref)

        xt = x_ref[...].astype(jnp.float32)
        tl = xt.shape[-1]
        col = li * tl + lax.broadcasted_iota(jnp.int32, xt.shape, 2)
        xt = jnp.where(col < L, xt, 0.0)                 # mask padded L tail
        acc_ref[...] += jnp.sum(xt, axis=-1)

        @pl.when(li == pl.num_programs(1) - 1)
        def _():
            y = acc_ref[...] * (1.0 / L)
            z = jnp.maximum(
                lax.dot_general(y, w1_ref[...].astype(jnp.float32),
                                dimension_numbers=(((1,), (1,)), ((), ())),
                                preferred_element_type=jnp.float32), 0.0)
            s_val = jax.nn.sigmoid(
                lax.dot_general(z, w2_ref[...].astype(jnp.float32),
                                dimension_numbers=(((1,), (1,)), ((), ())),
                                preferred_element_type=jnp.float32))
            # lane-replicate so pass 2 needs no relayout, only elementwise ops
            s_ref[...] = lax.broadcast_in_dim(s_val, s_ref.shape, (0, 1))

    s = pl.pallas_call(
        gate_kernel,
        out_shape=jax.ShapeDtypeStruct((bs, c, 128), jnp.float32),
        grid_spec=pltpu.PrefetchScalarGridSpec(
            num_scalar_prefetch=0,
            grid=(pl.cdiv(bs, tb_g), pl.cdiv(L, tl_g)),
            in_specs=[
                pl.BlockSpec((tb_g, c, tl_g), lambda i, l: (i, 0, l)),
                pl.BlockSpec((h, c), lambda i, l: (0, 0)),
                pl.BlockSpec((c, h), lambda i, l: (0, 0)),
            ],
            out_specs=pl.BlockSpec((tb_g, c, 128), lambda i, l: (i, 0, 0)),
            scratch_shapes=[pltpu.VMEM((tb_g, c), jnp.float32)],
        ),
        compiler_params=pltpu.CompilerParams(
            dimension_semantics=("parallel", "arbitrary"),
            vmem_limit_bytes=_vmem_limit(vmem_cap, 4 * tb_g * c * tl_g * itemsize),
        ),
    )(x, w1, w2)

    # ---- pass 2: out = x * s (+ identity) -----------------------------------
    n_streams = 3 if fused else 2
    tb_s, tl_s = pick(n_streams)
    rep = tl_s // 128

    def scale_kernel(*refs):
        if fused:
            x_ref, id_ref, s_ref, out_ref = refs
        else:
            x_ref, s_ref, out_ref = refs
            id_ref = None
        xt = x_ref[...]
        scale = s_ref[...] if rep == 1 else jnp.tile(s_ref[...], (1, 1, rep))
        out = xt * scale.astype(xt.dtype)
        if id_ref is not None:
            out = out + id_ref[...]
        out_ref[...] = out.astype(out_ref.dtype)

    big = pl.BlockSpec((tb_s, c, tl_s), lambda i, l: (i, 0, l))
    s_spec = pl.BlockSpec((tb_s, c, 128), lambda i, l: (i, 0, 0))
    in_specs = [big, big, s_spec] if fused else [big, s_spec]
    operands = (x, identity, s) if fused else (x, s)

    return pl.pallas_call(
        scale_kernel,
        out_shape=jax.ShapeDtypeStruct((bs, c, L), x.dtype),
        grid_spec=pltpu.PrefetchScalarGridSpec(
            num_scalar_prefetch=0,
            grid=(pl.cdiv(bs, tb_s), pl.cdiv(L, tl_s)),
            in_specs=in_specs,
            out_specs=big,
        ),
        compiler_params=pltpu.CompilerParams(
            dimension_semantics=("parallel", "parallel"),
            vmem_limit_bytes=_vmem_limit(
                vmem_cap, 2 * (n_streams + 1) * tb_s * c * tl_s * itemsize),
        ),
    )(*operands)


# --------------------------------------------------------------------------
# pure-JAX references
# --------------------------------------------------------------------------
def se_block_ref(x, w1, w2):
    y = jnp.mean(x, axis=-1)
    z = jnp.maximum(y @ w1.T, 0.0)
    s = jax.nn.sigmoid(z @ w2.T)
    return x * s[:, :, None]


def se_residual_ref(x, identity, w1, w2):
    return se_block_ref(x, w1, w2) + identity


# --------------------------------------------------------------------------
if __name__ == "__main__":
    # Shapes consistent with SE_Block(c=64, r=16, se_ch_low=4) inside ddResNet1D
    bs, c, L = 16, 64, 128
    h = 4                                   # max(c // 16, se_ch_low=4)

    key = jax.random.PRNGKey(0)
    kx, ki, k1, k2 = jax.random.split(key, 4)
    x = jax.random.normal(kx, (bs, c, L), dtype=jnp.float32)
    idn = jax.random.normal(ki, (bs, c, L), dtype=jnp.float32)
    # deterministic synthetic weights (PyTorch Linear layout: (out, in))
    w1 = jax.random.normal(k1, (h, c), dtype=jnp.float32) * (1.0 / c ** 0.5)
    w2 = jax.random.normal(k2, (c, h), dtype=jnp.float32) * (1.0 / h ** 0.5)

    ref_fused = se_residual_ref(x, idn, w1, w2)
    ref_gate = se_block_ref(x, w1, w2)
    # In-kernel MXU matmuls run at default precision (may use bf16 passes for
    # f32 operands), so f32 comparisons use ~1e-2-level tolerances.
    TOL32 = dict(atol=2e-2, rtol=2e-2)

    # 1) fused (x*s + identity), 4-step batch grid -> pipelined streaming DMAs
    out = jax.block_until_ready(se_residual_block(x, idn, w1, w2, batch_tile=4))
    assert out.shape == (bs, c, L) and out.dtype == x.dtype
    assert jnp.allclose(out, ref_fused, **TOL32)

    # 2) fused, automatic generation-aware tile/grid selection
    out = jax.block_until_ready(se_residual_block(x, idn, w1, w2))
    assert jnp.allclose(out, ref_fused, **TOL32)

    # 3) fused, partial last batch tile (grid=(3,), masked writeback)
    out = jax.block_until_ready(se_residual_block(x, idn, w1, w2, batch_tile=6))
    assert jnp.allclose(out, ref_fused, **TOL32)

    # 4) gate-only (plain SE_Block semantics)
    out = jax.block_until_ready(se_block(x, w1, w2, batch_tile=4))
    assert jnp.allclose(out, ref_gate, **TOL32)

    # 5) bf16 I/O: streaming rescale/add stays bf16; mean + MLP in f32
    xb, ib = x.astype(jnp.bfloat16), idn.astype(jnp.bfloat16)
    outb = jax.block_until_ready(se_residual_block(xb, ib, w1, w2, batch_tile=4))
    refb = se_residual_ref(xb.astype(jnp.float32), ib.astype(jnp.float32), w1, w2)
    assert outb.dtype == jnp.bfloat16
    assert jnp.allclose(outb.astype(jnp.float32), refb, atol=8e-2, rtol=8e-2)

    # 6) long-L two-pass fallback, forced via an artificially tiny budget; this
    #    exercises L tiling, the masked L tail, and the lane-replicated gate.
    bs2, L2 = 8, 320
    x2 = jax.random.normal(kx, (bs2, c, L2), dtype=jnp.float32)
    i2 = jax.random.normal(ki, (bs2, c, L2), dtype=jnp.float32)
    out2 = jax.block_until_ready(
        _se_two_pass(x2, i2, w1, w2, budget_bytes=64 * 1024,
                     vmem_cap=_vmem_capacity_bytes()))
    ref2 = se_residual_ref(x2, i2, w1, w2)
    assert jnp.allclose(out2, ref2, **TOL32)

    print("KERNEL_OK")
</pallas_src>

<mosaic_0001>
module attributes {stable_mosaic.version = 11 : i64} {
  func.func @_se_fused_kernel(%arg0: i32, %arg1: memref<4x64x128xf32, #tpu.memory_space<vmem>>, %arg2: memref<4x64x128xf32, #tpu.memory_space<vmem>>, %arg3: memref<4x64xf32, #tpu.memory_space<vmem>>, %arg4: memref<64x4xf32, #tpu.memory_space<vmem>>, %arg5: memref<4x64x128xf32, #tpu.memory_space<vmem>>) attributes {dimension_semantics = [#tpu.dimension_semantics<parallel>], iteration_bounds = array<i64: 4>, scalar_prefetch = 0 : i64, scratch_operands = 0 : i64, tpu.core_type = #tpu.core_type<tc>, window_params = [{transform_indices = @transform_0, window_bounds = array<i64: 4, 64, 128>}, {transform_indices = @transform_1, window_bounds = array<i64: 4, 64, 128>}, {pipeline_mode = #tpu.pipeline_mode<synchronous>, transform_indices = @transform_2, window_bounds = array<i64: 4, 64>}, {pipeline_mode = #tpu.pipeline_mode<synchronous>, transform_indices = @transform_3, window_bounds = array<i64: 64, 4>}, {transform_indices = @transform_4, window_bounds = array<i64: 4, 64, 128>}]} {
    %c0 = arith.constant 0 : index
    %c0_0 = arith.constant 0 : index
    %c0_1 = arith.constant 0 : index
    %0 = vector.load %arg1[%c0, %c0_0, %c0_1] : memref<4x64x128xf32, #tpu.memory_space<vmem>>, vector<4x64x128xf32>
    %cst = arith.constant dense<0.000000e+00> : vector<4x64xf32>
    %1 = vector.multi_reduction <add>, %0, %cst [2] : vector<4x64x128xf32> to vector<4x64xf32>
    %cst_2 = arith.constant 1.280000e+02 : f32
    %2 = vector.broadcast %cst_2 : f32 to vector<4x64xf32>
    %3 = arith.divf %1, %2 : vector<4x64xf32>
    %c0_3 = arith.constant 0 : index
    %c0_4 = arith.constant 0 : index
    %4 = vector.load %arg3[%c0_3, %c0_4] : memref<4x64xf32, #tpu.memory_space<vmem>>, vector<4x64xf32>
    %cst_5 = arith.constant dense<0.000000e+00> : vector<4x4xf32>
    %5 = tpu.matmul %3, %4, %cst_5 {dimension_numbers = #tpu.dot_dimension_numbers<[1], [1], [0], [0], [0, 0, 1, 0], [], []>} : vector<4x64xf32>, vector<4x64xf32>, vector<4x4xf32> -> vector<4x4xf32>
    %cst_6 = arith.constant 0.000000e+00 : f32
    %6 = vector.broadcast %cst_6 : f32 to vector<4x4xf32>
    %7 = arith.maximumf %5, %6 : vector<4x4xf32>
    %c0_7 = arith.constant 0 : index
    %c0_8 = arith.constant 0 : index
    %8 = vector.load %arg4[%c0_7, %c0_8] : memref<64x4xf32, #tpu.memory_space<vmem>>, vector<64x4xf32>
    %cst_9 = arith.constant dense<0.000000e+00> : vector<4x64xf32>
    %9 = tpu.matmul %7, %8, %cst_9 {dimension_numbers = #tpu.dot_dimension_numbers<[1], [1], [0], [0], [0, 0, 1, 0], [], []>} : vector<4x4xf32>, vector<64x4xf32>, vector<4x64xf32> -> vector<4x64xf32>
    %10 = arith.negf %9 : vector<4x64xf32>
    %11 = math.exp %10 : vector<4x64xf32>
    %cst_10 = arith.constant 1.000000e+00 : f32
    %12 = vector.broadcast %cst_10 : f32 to vector<4x64xf32>
    %13 = arith.addf %12, %11 : vector<4x64xf32>
    %14 = arith.divf %12, %13 : vector<4x64xf32>
    %c0_11 = arith.constant 0 : index
    %c0_12 = arith.constant 0 : index
    %c0_13 = arith.constant 0 : index
    %15 = vector.load %arg1[%c0_11, %c0_12, %c0_13] : memref<4x64x128xf32, #tpu.memory_space<vmem>>, vector<4x64x128xf32>
    %16 = vector.shape_cast %14 : vector<4x64xf32> to vector<4x64x1xf32>
    %17 = vector.broadcast %16 : vector<4x64x1xf32> to vector<4x64x128xf32>
    %18 = arith.mulf %15, %17 : vector<4x64x128xf32>
    %c0_14 = arith.constant 0 : index
    %c0_15 = arith.constant 0 : index
    %c0_16 = arith.constant 0 : index
    %19 = vector.load %arg2[%c0_14, %c0_15, %c0_16] : memref<4x64x128xf32, #tpu.memory_space<vmem>>, vector<4x64x128xf32>
    %20 = arith.addf %18, %19 : vector<4x64x128xf32>
    %c0_17 = arith.constant 0 : index
    %c0_18 = arith.constant 0 : index
    %c0_19 = arith.constant 0 : index
    %21 = vector.load %arg5[%c0_17, %c0_18, %c0_19] : memref<4x64x128xf32, #tpu.memory_space<vmem>>, vector<4x64x128xf32>
    tpu.vector_store %arg5[%c0_17, %c0_18, %c0_19], %20 {strides = array<i32>} : memref<4x64x128xf32, #tpu.memory_space<vmem>>, vector<4x64x128xf32>,
    return
  }
  func.func @transform_0(%arg0: i32) -> (i32, i32, i32) {
    %c0_i32 = arith.constant 0 : i32
    %c0_i32_0 = arith.constant 0 : i32
    %c0_i32_1 = arith.constant 0 : i32
    return %arg0, %c0_i32, %c0_i32_0 : i32, i32, i32
  }
  func.func @transform_1(%arg0: i32) -> (i32, i32, i32) {
    %c0_i32 = arith.constant 0 : i32
    %c0_i32_0 = arith.constant 0 : i32
    %c0_i32_1 = arith.constant 0 : i32
    return %arg0, %c0_i32, %c0_i32_0 : i32, i32, i32
  }
  func.func @transform_2(%arg0: i32) -> (i32, i32) {
    %c0_i32 = arith.constant 0 : i32
    %c0_i32_0 = arith.constant 0 : i32
    %c0_i32_1 = arith.constant 0 : i32
    return %c0_i32, %c0_i32_0 : i32, i32
  }
  func.func @transform_3(%arg0: i32) -> (i32, i32) {
    %c0_i32 = arith.constant 0 : i32
    %c0_i32_0 = arith.constant 0 : i32
    %c0_i32_1 = arith.constant 0 : i32
    return %c0_i32, %c0_i32_0 : i32, i32
  }
  func.func @transform_4(%arg0: i32) -> (i32, i32, i32) {
    %c0_i32 = arith.constant 0 : i32
    %c0_i32_0 = arith.constant 0 : i32
    %c0_i32_1 = arith.constant 0 : i32
    return %arg0, %c0_i32, %c0_i32_0 : i32, i32, i32
  }
}

</mosaic_0001>

<llo_original>
// kernel: tpu_custom_call.1
$region0: #{tpu_custom_call.1}
  #allocation0 [shape = 'u32[]', space=smem, size = 0x4, offset = 0x4, fixed_abs, tag = 'smem constant byte address 0x4 - core index']
  #allocation1 [shape = 'u32[144,128]{1,0:T(1,128)}', space=vmem, size = 0x12000, scoped, tag = 'internal scratch']
  %s0 = inlined_call_operand.hbm [shape: f32[16,64,128], index: 0, kind: input, shape index: {}]
  %s1 = inlined_call_operand.hbm [shape: f32[16,64,128], index: 1, kind: input, shape index: {}]
  %s2 = inlined_call_operand.vmem [shape: f32[4,64], index: 2, kind: input, shape index: {}]
  %s3 = inlined_call_operand.vmem [shape: f32[64,4], index: 3, kind: input, shape index: {}]
  %s4 = inlined_call_operand.hbm [shape: f32[16,64,128], index: 4, kind: output, shape index: {}]
  %s5 = sld [smem:[#allocation0]]
  $region57: #{tpu_custom_call.1} parent=0
    _
  %s7 = ssub.s32 1, %s5
  %s8 = scalar_select 0, %s7, %s5
  $region1: #{tpu_custom_call.1} parent=0
    #allocation2 [shape = 'u8[262144]{0}', space=vmem, size = 0x40000, scoped, tag = 'input window, operand 0']
    #allocation3 [shape = 's32[2]{0}', space=sflag, size = 0x8, scoped, tag = 'scoped memory for tpu_custom_call.1']
    #allocation4 [shape = 's32[2]{0}', space=sflag, size = 0x8, scoped, tag = 'scoped memory for tpu_custom_call.1']
    #allocation5 [shape = 'u8[262144]{0}', space=vmem, size = 0x40000, scoped, tag = 'input window, operand 1']
    #allocation6 [shape = 's32[2]{0}', space=sflag, size = 0x8, scoped, tag = 'scoped memory for tpu_custom_call.1']
    #allocation7 [shape = 'u8[262144]{0}', space=vmem, size = 0x40000, scoped, tag = 'output window, operand 0']
    %9 = vsyncpa [#allocation3], 0
    %s10 = scalar_lea.sflag [#allocation3], 1
    %11 = vsyncpa %s10, 0
    %12 = vsyncpa [#allocation6], 0
    %s13 = scalar_lea.sflag [#allocation6], 1
    %14 = vsyncpa %s13, 0
    %15 = vsyncpa [#allocation4], 0
    %s16 = scalar_lea.sflag [#allocation4], 1
    %17 = vsyncpa %s16, 0
    loop: start=0, step=1, limit=6
    $region2: #{tpu_custom_call.1} parent=1 // loop_pre_header
      _
    $region3: #{tpu_custom_call.1} parent=1 // loop_header
      %s19 = sphi 0, %s23
      %p20 = scmp.ge.s32.totalorder %s19, 6
      %s29 = sphi 0, %s31
      %s32 = sphi 0, %s29
      %s33 = sphi 0, %s32
      %s49 = sphi 0, %s33
      %s55 = sphi 0, %s57
      %s58 = sphi 0, %s55
      %s59 = sphi 0, %s58
      %s75 = sphi 0, %s59
      %s79 = sphi 0, %s79
      %s81 = sphi 0, %s79
      %s82 = sphi 0, %s81
      %s96 = sphi 0, %s82
      %s100 = sphi 0, %s100
      %s102 = sphi 0, %s100
      %s103 = sphi 0, %s102
      %s117 = sphi 0, %s103
      %s123 = sphi 0, %s125
      %s126 = sphi 0, %s123
      %s127 = sphi 0, %s126
      %s143 = sphi 0, %s127
    $region4: #{tpu_custom_call.1} parent=1 // loop_header_branch
      %22 = sbr.rel (%p20) target = $region8
    $region5: #{tpu_custom_call.1} parent=1 // loop_body
      %s24 = ssub.s32 %s19, 1
      %s25 = ssub.s32 %s19, 2
      %s26 = sadd.s32 %s19, 1
      %s27 = ssub.s32 %s19, %s26
      %p28 = scmp.eq.s32.totalorder %s27, 0
      %s30 = sadd.s32 %s29, 1
      %s31 = scalar_select %p28, %s29, %s30
      %p34 = pneg %p28
      %p35 = scmp.eq.s32.totalorder %s19, 3
      %p36 = por %p34, %p35
      %p37 = scmp.ne.s32.totalorder %s29, %s32
      %p38 = scmp.eq.s32.totalorder %s19, 0
      %p39 = por %p37, %p38
      %p40 = scmp.ne.s32.totalorder %s29, %s32
      %p41 = scmp.eq.s32.totalorder %s24, 3
      %p42 = por %p40, %p41
      %p43 = scmp.ne.s32.totalorder %s32, %s33
      %p44 = scmp.eq.s32.totalorder %s24, 0
      %p45 = por %p43, %p44
      %p46 = scmp.ne.s32.totalorder %s32, %s33
      %p47 = scmp.eq.s32.totalorder %s25, 3
      %p48 = por %p46, %p47
      %p50 = scmp.ne.s32.totalorder %s33, %s49
      %p51 = scmp.eq.s32.totalorder %s25, 0
      %p52 = por %p50, %p51
      %s53 = ssub.s32 %s19, %s26
      %p54 = scmp.eq.s32.totalorder %s53, 0
      %s56 = sadd.s32 %s55, 1
      %s57 = scalar_select %p54, %s55, %s56
      %p60 = pneg %p54
      %p61 = scmp.eq.s32.totalorder %s19, 3
      %p62 = por %p60, %p61
      %p63 = scmp.ne.s32.totalorder %s55, %s58
      %p64 = scmp.eq.s32.totalorder %s19, 0
      %p65 = por %p63, %p64
      %p66 = scmp.ne.s32.totalorder %s55, %s58
      %p67 = scmp.eq.s32.totalorder %s24, 3
      %p68 = por %p66, %p67
      %p69 = scmp.ne.s32.totalorder %s58, %s59
      %p70 = scmp.eq.s32.totalorder %s24, 0
      %p71 = por %p69, %p70
      %p72 = scmp.ne.s32.totalorder %s58, %s59
      %p73 = scmp.eq.s32.totalorder %s25, 3
      %p74 = por %p72, %p73
      %p76 = scmp.ne.s32.totalorder %s59, %s75
      %p77 = scmp.eq.s32.totalorder %s25, 0
      %p78 = por %p76, %p77
      %s80 = sadd.s32 %s79, 1
      %p83 = scmp.eq.s32.totalorder %s19, 3
      %p84 = scmp.ne.s32.totalorder %s79, %s81
      %p85 = scmp.eq.s32.totalorder %s19, 0
      %p86 = por %p84, %p85
      %p87 = scmp.ne.s32.totalorder %s79, %s81
      %p88 = scmp.eq.s32.totalorder %s24, 3
      %p89 = por %p87, %p88
      %p90 = scmp.ne.s32.totalorder %s81, %s82
      %p91 = scmp.eq.s32.totalorder %s24, 0
      %p92 = por %p90, %p91
      %p93 = scmp.ne.s32.totalorder %s81, %s82
      %p94 = scmp.eq.s32.totalorder %s25, 3
      %p95 = por %p93, %p94
      %p97 = scmp.ne.s32.totalorder %s82, %s96
      %p98 = scmp.eq.s32.totalorder %s25, 0
      %p99 = por %p97, %p98
      %s101 = sadd.s32 %s100, 1
      %p104 = scmp.eq.s32.totalorder %s19, 3
      %p105 = scmp.ne.s32.totalorder %s100, %s102
      %p106 = scmp.eq.s32.totalorder %s19, 0
      %p107 = por %p105, %p106
      %p108 = scmp.ne.s32.totalorder %s100, %s102
      %p109 = scmp.eq.s32.totalorder %s24, 3
      %p110 = por %p108, %p109
      %p111 = scmp.ne.s32.totalorder %s102, %s103
      %p112 = scmp.eq.s32.totalorder %s24, 0
      %p113 = por %p111, %p112
      %p114 = scmp.ne.s32.totalorder %s102, %s103
      %p115 = scmp.eq.s32.totalorder %s25, 3
      %p116 = por %p114, %p115
      %p118 = scmp.ne.s32.totalorder %s103, %s117
      %p119 = scmp.eq.s32.totalorder %s25, 0
      %p120 = por %p118, %p119
      %s121 = ssub.s32 %s19, %s26
      %p122 = scmp.eq.s32.totalorder %s121, 0
      %s124 = sadd.s32 %s123, 1
      %s125 = scalar_select %p122, %s123, %s124
      %p128 = pneg %p122
      %p129 = scmp.eq.s32.totalorder %s19, 3
      %p130 = por %p128, %p129
      %p131 = scmp.ne.s32.totalorder %s123, %s126
      %p132 = scmp.eq.s32.totalorder %s19, 0
      %p133 = por %p131, %p132
      %p134 = scmp.ne.s32.totalorder %s123, %s126
      %p135 = scmp.eq.s32.totalorder %s24, 3
      %p136 = por %p134, %p135
      %p137 = scmp.ne.s32.totalorder %s126, %s127
      %p138 = scmp.eq.s32.totalorder %s24, 0
      %p139 = por %p137, %p138
      %p140 = scmp.ne.s32.totalorder %s126, %s127
      %p141 = scmp.eq.s32.totalorder %s25, 3
      %p142 = por %p140, %p141
      %p144 = scmp.ne.s32.totalorder %s127, %s143
      %p145 = scmp.eq.s32.totalorder %s25, 0
      %p146 = por %p144, %p145
      %p147 = scmp.le.s32.totalorder 1, %s19
      %p148 = scmp.lt.s32.totalorder %s19, 5
      %p149 = pnand %p147, %p148
      %p150 = pneg %p149
      // Predicated region
      $region9: #{tpu_custom_call.1} parent=5 // pred_check
        _
      $region10: #{tpu_custom_call.1} parent=5 // pred_check_branch
        %152 = sbr.rel (%p149) target = $region12
      $region11: #{tpu_custom_call.1} parent=5 // pred_region
        %s153 = ssub.s32 %s19, 1
        // Predicated region
        $region13: #{tpu_custom_call.1} parent=11 // pred_check
          %p154 = pneg %p92
        $region14: #{tpu_custom_call.1} parent=11 // pred_check_branch
          %156 = sbr.rel (%p154) target = $region16
        $region15: #{tpu_custom_call.1} parent=11 // pred_region
          _
        $region16: #{tpu_custom_call.1} parent=11 // pred_fallthru
          _
        // Predicated region
        $region17: #{tpu_custom_call.1} parent=11 // pred_check
          %p157 = pneg %p113
        $region18: #{tpu_custom_call.1} parent=11 // pred_check_branch
          %159 = sbr.rel (%p157) target = $region20
        $region19: #{tpu_custom_call.1} parent=11 // pred_region
          _
        $region20: #{tpu_custom_call.1} parent=11 // pred_fallthru
          _
      $region12: #{tpu_custom_call.1} parent=5 // pred_fallthru
        _
      %p160 = scmp.lt.s32.totalorder %s19, 4
      // Predicated region
      $region21: #{tpu_custom_call.1} parent=5 // pred_check
        %p161 = pneg %p160
      $region22: #{tpu_custom_call.1} parent=5 // pred_check_branch
        %163 = sbr.rel (%p161) target = $region24
      $region23: #{tpu_custom_call.1} parent=5 // pred_region
        // Predicated region
        $region25: #{tpu_custom_call.1} parent=23 // pred_check
          %p164 = pneg %p39
        $region26: #{tpu_custom_call.1} parent=23 // pred_check_branch
          %166 = sbr.rel (%p164) target = $region28
        $region27: #{tpu_custom_call.1} parent=23 // pred_region
          %s167 = sand.u32 %s29, 1
          %s168 = scalar_lea.sflag [#allocation3], %s167
          %s169 = sand.u32 %s29, 1
          %s170 = smul.addr %s169, 256
          %s171 = scalar_lea.vmem [#allocation2], %s170
          %s172 = smul.u32 4, %s19
          %s174 = ssub.s32 4096, 4096
          %175 = vsyncadd %s168, %s174
          %s176 = smul.addr %s172, 8
          %s177 = smul.addr %s176, 128
          %s178 = scalar_lea.hbm %s0, %s177
          %s179 = sshll.u32 %s171, 4
          %s180 = int_to_ptr.vmem [resolvable:$true] %s179
          %185 = dma.hbm_to_vmem [thread:$0]  %s178, 4096, %s180, %s168, 128, 128, 8
        $region28: #{tpu_custom_call.1} parent=23 // pred_fallthru
          _
        // Predicated region
        $region29: #{tpu_custom_call.1} parent=23 // pred_check
          %p186 = pneg %p65
        $region30: #{tpu_custom_call.1} parent=23 // pred_check_branch
          %188 = sbr.rel (%p186) target = $region32
        $region31: #{tpu_custom_call.1} parent=23 // pred_region
          %s189 = sand.u32 %s55, 1
          %s190 = scalar_lea.sflag [#allocation6], %s189
          %s191 = sand.u32 %s55, 1
          %s192 = smul.addr %s191, 256
          %s193 = scalar_lea.vmem [#allocation5], %s192
          %s194 = smul.u32 4, %s19
          %s196 = ssub.s32 4096, 4096
          %197 = vsyncadd %s190, %s196
          %s198 = smul.addr %s194, 8
          %s199 = smul.addr %s198, 128
          %s200 = scalar_lea.hbm %s1, %s199
          %s201 = sshll.u32 %s193, 4
          %s202 = int_to_ptr.vmem [resolvable:$true] %s201
          %207 = dma.hbm_to_vmem [thread:$0]  %s200, 4096, %s202, %s190, 128, 128, 8
        $region32: #{tpu_custom_call.1} parent=23 // pred_fallthru
          _
      $region24: #{tpu_custom_call.1} parent=5 // pred_fallthru
        _
      %p208 = scmp.le.s32.totalorder 1, %s19
      %p209 = scmp.lt.s32.totalorder %s19, 5
      %p210 = pnand %p208, %p209
      %p211 = pneg %p210
      // Predicated region
      $region33: #{tpu_custom_call.1} parent=5 // pred_check
        _
      $region34: #{tpu_custom_call.1} parent=5 // pred_check_branch
        %213 = sbr.rel (%p210) target = $region36
      $region35: #{tpu_custom_call.1} parent=5 // pred_region
        %s214 = ssub.s32 %s19, 1
        %s215 = sand.u32 %s32, 1
        %s216 = scalar_lea.sflag [#allocation3], %s215
        %s217 = sand.u32 %s32, 1
        %s218 = smul.addr %s217, 256
        %s219 = scalar_lea.vmem [#allocation2], %s218
        // Predicated region
        $region37: #{tpu_custom_call.1} parent=35 // pred_check
          %p220 = pneg %p45
        $region38: #{tpu_custom_call.1} parent=35 // pred_check_branch
          %222 = sbr.rel (%p220) target = $region40
        $region39: #{tpu_custom_call.1} parent=35 // pred_region
          %223 = dma.done %s216, 4096
        $region40: #{tpu_custom_call.1} parent=35 // pred_fallthru
          _
        %s224 = sand.u32 %s58, 1
        %s225 = scalar_lea.sflag [#allocation6], %s224
        %s226 = sand.u32 %s58, 1
        %s227 = smul.addr %s226, 256
        %s228 = scalar_lea.vmem [#allocation5], %s227
        // Predicated region
        $region41: #{tpu_custom_call.1} parent=35 // pred_check
          %p229 = pneg %p71
        $region42: #{tpu_custom_call.1} parent=35 // pred_check_branch
          %231 = sbr.rel (%p229) target = $region44
        $region43: #{tpu_custom_call.1} parent=35 // pred_region
          %232 = dma.done %s225, 4096
        $region44: #{tpu_custom_call.1} parent=35 // pred_fallthru
          _
        %s233 = sand.u32 %s32, 1
        %s234 = scalar_lea.sflag [#allocation3], %s233
        %s235 = sand.u32 %s32, 1
        %s236 = smul.addr %s235, 256
        %s237 = scalar_lea.vmem [#allocation2], %s236
        %p238 = pneg %p45
        %p239 = pneg %p42
        %s240 = sand.u32 %s58, 1
        %s241 = scalar_lea.sflag [#allocation6], %s240
        %s242 = sand.u32 %s58, 1
        %s243 = smul.addr %s242, 256
        %s244 = scalar_lea.vmem [#allocation5], %s243
        %p245 = pneg %p71
        %p246 = pneg %p68
        %p247 = pneg %p92
        %p248 = pneg %p89
        %p249 = pneg %p113
        %p250 = pneg %p110
        %p251 = pneg %p139
        %p252 = pneg %p136
        %s253 = sand.u32 %s126, 1
        %s254 = scalar_lea.sflag [#allocation4], %s253
        %s255 = sand.u32 %s126, 1
        %s256 = smul.addr %s255, 256
        %s257 = scalar_lea.vmem [#allocation7], %s256
        %s258 = smul.u32 4, %s24
        %s259 = smul.u32 4, %s24
        %s260 = smul.u32 4, %s24
        %v261 = vld [vmem:[%s219] sm:$0xff]
        %v262 = vld [vmem:[%s219 + $0x8] sm:$0xff]
        %v263 = vld [vmem:[%s219 + $0x10] sm:$0xff]
        %v264 = vld [vmem:[%s219 + $0x18] sm:$0xff]
        %v265 = vld [vmem:[%s219 + $0x20] sm:$0xff]
        %v266 = vld [vmem:[%s219 + $0x28] sm:$0xff]
        %v267 = vld [vmem:[%s219 + $0x30] sm:$0xff]
        %v268 = vld [vmem:[%s219 + $0x38] sm:$0xff]
        %v269 = vld [vmem:[%s219 + $0x40] sm:$0xff]
        %v270 = vld [vmem:[%s219 + $0x48] sm:$0xff]
        %v271 = vld [vmem:[%s219 + $0x50] sm:$0xff]
        %v272 = vld [vmem:[%s219 + $0x58] sm:$0xff]
        %v273 = vld [vmem:[%s219 + $0x60] sm:$0xff]
        %v274 = vld [vmem:[%s219 + $0x68] sm:$0xff]
        %v275 = vld [vmem:[%s219 + $0x70] sm:$0xff]
        %v276 = vld [vmem:[%s219 + $0x78] sm:$0xff]
        %v277 = vld [vmem:[%s219 + $0x80] sm:$0xff]
        %v278 = vld [vmem:[%s219 + $0x88] sm:$0xff]
        %v279 = vld [vmem:[%s219 + $0x90] sm:$0xff]
        %v280 = vld [vmem:[%s219 + $0x98] sm:$0xff]
        %v281 = vld [vmem:[%s219 + $0xa0] sm:$0xff]
        %v282 = vld [vmem:[%s219 + $0xa8] sm:$0xff]
        %v283 = vld [vmem:[%s219 + $0xb0] sm:$0xff]
        %v284 = vld [vmem:[%s219 + $0xb8] sm:$0xff]
        %v285 = vld [vmem:[%s219 + $0xc0] sm:$0xff]
        %v286 = vld [vmem:[%s219 + $0xc8] sm:$0xff]
        %v287 = vld [vmem:[%s219 + $0xd0] sm:$0xff]
        %v288 = vld [vmem:[%s219 + $0xd8] sm:$0xff]
        %v289 = vld [vmem:[%s219 + $0xe0] sm:$0xff]
        %v290 = vld [vmem:[%s219 + $0xe8] sm:$0xff]
        %v291 = vld [vmem:[%s219 + $0xf0] sm:$0xff]
        %v292 = vld [vmem:[%s219 + $0xf8] sm:$0xff]
        %293 = vadd.xlane.f32.xlu0 %v261
        %v294 = vpop.xlane.xlu0 %293
        %295 = vadd.xlane.f32.xlu0 %v262
        %v296 = vpop.xlane.xlu0 %295
        %297 = vadd.xlane.f32.xlu0 %v263
        %v298 = vpop.xlane.xlu0 %297
        %299 = vadd.xlane.f32.xlu0 %v264
        %v300 = vpop.xlane.xlu0 %299
        %301 = vadd.xlane.f32.xlu0 %v265
        %v302 = vpop.xlane.xlu0 %301
        %303 = vadd.xlane.f32.xlu0 %v266
        %v304 = vpop.xlane.xlu0 %303
        %305 = vadd.xlane.f32.xlu0 %v267
        %v306 = vpop.xlane.xlu0 %305
        %307 = vadd.xlane.f32.xlu0 %v268
        %v308 = vpop.xlane.xlu0 %307
        %309 = vadd.xlane.f32.xlu0 %v269
        %v310 = vpop.xlane.xlu0 %309
        %311 = vadd.xlane.f32.xlu0 %v270
        %v312 = vpop.xlane.xlu0 %311
        %313 = vadd.xlane.f32.xlu0 %v271
        %v314 = vpop.xlane.xlu0 %313
        %315 = vadd.xlane.f32.xlu0 %v272
        %v316 = vpop.xlane.xlu0 %315
        %317 = vadd.xlane.f32.xlu0 %v273
        %v318 = vpop.xlane.xlu0 %317
        %319 = vadd.xlane.f32.xlu0 %v274
        %v320 = vpop.xlane.xlu0 %319
        %321 = vadd.xlane.f32.xlu0 %v275
        %v322 = vpop.xlane.xlu0 %321
        %323 = vadd.xlane.f32.xlu0 %v276
        %v324 = vpop.xlane.xlu0 %323
        %325 = vadd.xlane.f32.xlu0 %v277
        %v326 = vpop.xlane.xlu0 %325
        %327 = vadd.xlane.f32.xlu0 %v278
        %v328 = vpop.xlane.xlu0 %327
        %329 = vadd.xlane.f32.xlu0 %v279
        %v330 = vpop.xlane.xlu0 %329
        %331 = vadd.xlane.f32.xlu0 %v280
        %v332 = vpop.xlane.xlu0 %331
        %333 = vadd.xlane.f32.xlu0 %v281
        %v334 = vpop.xlane.xlu0 %333
        %335 = vadd.xlane.f32.xlu0 %v282
        %v336 = vpop.xlane.xlu0 %335
        %337 = vadd.xlane.f32.xlu0 %v283
        %v338 = vpop.xlane.xlu0 %337
        %339 = vadd.xlane.f32.xlu0 %v284
        %v340 = vpop.xlane.xlu0 %339
        %341 = vadd.xlane.f32.xlu0 %v285
        %v342 = vpop.xlane.xlu0 %341
        %343 = vadd.xlane.f32.xlu0 %v286
        %v344 = vpop.xlane.xlu0 %343
        %345 = vadd.xlane.f32.xlu0 %v287
        %v346 = vpop.xlane.xlu0 %345
        %347 = vadd.xlane.f32.xlu0 %v288
        %v348 = vpop.xlane.xlu0 %347
        %349 = vadd.xlane.f32.xlu0 %v289
        %v350 = vpop.xlane.xlu0 %349
        %351 = vadd.xlane.f32.xlu0 %v290
        %v352 = vpop.xlane.xlu0 %351
        %353 = vadd.xlane.f32.xlu0 %v291
        %v354 = vpop.xlane.xlu0 %353
        %355 = vadd.xlane.f32.xlu0 %v292
        %v356 = vpop.xlane.xlu0 %355
        %v357 = vrcp.pop 128.0
        %v358 = vmul.f32 %v294, %v357
        %v359 = vmul.f32 %v296, %v357
        %v360 = vmul.f32 %v298, %v357
        %v361 = vmul.f32 %v300, %v357
        %v362 = vmul.f32 %v302, %v357
        %v363 = vmul.f32 %v304, %v357
        %v364 = vmul.f32 %v306, %v357
        %v365 = vmul.f32 %v308, %v357
        %v366 = vmul.f32 %v310, %v357
        %v367 = vmul.f32 %v312, %v357
        %v368 = vmul.f32 %v314, %v357
        %v369 = vmul.f32 %v316, %v357
        %v370 = vmul.f32 %v318, %v357
        %v371 = vmul.f32 %v320, %v357
        %v372 = vmul.f32 %v322, %v357
        %v373 = vmul.f32 %v324, %v357
        %v374 = vmul.f32 %v326, %v357
        %v375 = vmul.f32 %v328, %v357
        %v376 = vmul.f32 %v330, %v357
        %v377 = vmul.f32 %v332, %v357
        %v378 = vmul.f32 %v334, %v357
        %v379 = vmul.f32 %v336, %v357
        %v380 = vmul.f32 %v338, %v357
        %v381 = vmul.f32 %v340, %v357
        %v382 = vmul.f32 %v342, %v357
        %v383 = vmul.f32 %v344, %v357
        %v384 = vmul.f32 %v346, %v357
        %v385 = vmul.f32 %v348, %v357
        %v386 = vmul.f32 %v350, %v357
        %v387 = vmul.f32 %v352, %v357
        %v388 = vmul.f32 %v354, %v357
        %v389 = vmul.f32 %v356, %v357
        %v390 = vld [vmem:[%s2] sm:$0xf]
        %v423 = vlaneseq
        %v424 = vand.u32 %v423, 127
        %v425 = vlaneseq
        %v426 = vshrl.u32 %v425, 7
        %v427 = vsub.s32 %v424, %v426
        %v428 = vrot.slane %v358, %v427
        %v429 = vadd.s32 %v424, 4294967288
        %v430 = vlaneseq
        %v431 = vshrl.u32 %v430, 7
        %v432 = vsub.s32 %v429, %v431
        %v433 = vrot.slane %v359, %v432
        %vm434 = vcmask 130112
        %v435 = vsel %vm434, %v433, %v428
        %v436 = vadd.s32 %v424, 4294967280
        %v437 = vlaneseq
        %v438 = vshrl.u32 %v437, 7
        %v439 = vsub.s32 %v436, %v438
        %v440 = vrot.slane %v360, %v439
        %vm441 = vcmask 195712
        %v442 = vsel %vm441, %v440, %v435
        %v443 = vadd.s32 %v424, 4294967272
        %v444 = vlaneseq
        %v445 = vshrl.u32 %v444, 7
        %v446 = vsub.s32 %v443, %v445
        %v447 = vrot.slane %v361, %v446
        %vm448 = vcmask 261312
        %v449 = vsel %vm448, %v447, %v442
        %v450 = vadd.s32 %v424, 4294967264
        %v451 = vlaneseq
        %v452 = vshrl.u32 %v451, 7
        %v453 = vsub.s32 %v450, %v452
        %v454 = vrot.slane %v362, %v453
        %vm455 = vcmask 326912
        %v456 = vsel %vm455, %v454, %v449
        %v457 = vadd.s32 %v424, 4294967256
        %v458 = vlaneseq
        %v459 = vshrl.u32 %v458, 7
        %v460 = vsub.s32 %v457, %v459
        %v461 = vrot.slane %v363, %v460
        %vm462 = vcmask 392512
        %v463 = vsel %vm462, %v461, %v456
        %v464 = vadd.s32 %v424, 4294967248
        %v465 = vlaneseq
        %v466 = vshrl.u32 %v465, 7
        %v467 = vsub.s32 %v464, %v466
        %v468 = vrot.slane %v364, %v467
        %vm469 = vcmask 458112
        %v470 = vsel %vm469, %v468, %v463
        %v471 = vadd.s32 %v424, 4294967240
        %v472 = vlaneseq
        %v473 = vshrl.u32 %v472, 7
        %v474 = vsub.s32 %v471, %v473
        %v475 = vrot.slane %v365, %v474
        %vm476 = vcmask 523712
        %v477 = vsel %vm476, %v475, %v470
        %v478 = vlaneseq
        %v479 = vshrl.u32 %v478, 7
        %v480 = vsub.s32 %v424, %v479
        %v481 = vrot.slane %v366, %v480
        %v482 = vlaneseq
        %v483 = vshrl.u32 %v482, 7
        %v484 = vsub.s32 %v429, %v483
        %v485 = vrot.slane %v367, %v484
        %v486 = vsel %vm434, %v485, %v481
        %v487 = vlaneseq
        %v488 = vshrl.u32 %v487, 7
        %v489 = vsub.s32 %v436, %v488
        %v490 = vrot.slane %v368, %v489
        %v491 = vsel %vm441, %v490, %v486
        %v492 = vlaneseq
        %v493 = vshrl.u32 %v492, 7
        %v494 = vsub.s32 %v443, %v493
        %v495 = vrot.slane %v369, %v494
        %v496 = vsel %vm448, %v495, %v491
        %v497 = vlaneseq
        %v498 = vshrl.u32 %v497, 7
        %v499 = vsub.s32 %v450, %v498
        %v500 = vrot.slane %v370, %v499
        %v501 = vsel %vm455, %v500, %v496
        %v502 = vlaneseq
        %v503 = vshrl.u32 %v502, 7
        %v504 = vsub.s32 %v457, %v503
        %v505 = vrot.slane %v371, %v504
        %v506 = vsel %vm462, %v505, %v501
        %v507 = vlaneseq
        %v508 = vshrl.u32 %v507, 7
        %v509 = vsub.s32 %v464, %v508
        %v510 = vrot.slane %v372, %v509
        %v511 = vsel %vm469, %v510, %v506
        %v512 = vlaneseq
        %v513 = vshrl.u32 %v512, 7
        %v514 = vsub.s32 %v471, %v513
        %v515 = vrot.slane %v373, %v514
        %v516 = vsel %vm476, %v515, %v511
        %v517 = vlaneseq
        %v518 = vshrl.u32 %v517, 7
        %v519 = vsub.s32 %v424, %v518
        %v520 = vrot.slane %v374, %v519
        %v521 = vlaneseq
        %v522 = vshrl.u32 %v521, 7
        %v523 = vsub.s32 %v429, %v522
        %v524 = vrot.slane %v375, %v523
        %v525 = vsel %vm434, %v524, %v520
        %v526 = vlaneseq
        %v527 = vshrl.u32 %v526, 7
        %v528 = vsub.s32 %v436, %v527
        %v529 = vrot.slane %v376, %v528
        %v530 = vsel %vm441, %v529, %v525
        %v531 = vlaneseq
        %v532 = vshrl.u32 %v531, 7
        %v533 = vsub.s32 %v443, %v532
        %v534 = vrot.slane %v377, %v533
        %v535 = vsel %vm448, %v534, %v530
        %v536 = vlaneseq
        %v537 = vshrl.u32 %v536, 7
        %v538 = vsub.s32 %v450, %v537
        %v539 = vrot.slane %v378, %v538
        %v540 = vsel %vm455, %v539, %v535
        %v541 = vlaneseq
        %v542 = vshrl.u32 %v541, 7
        %v543 = vsub.s32 %v457, %v542
        %v544 = vrot.slane %v379, %v543
        %v545 = vsel %vm462, %v544, %v540
        %v546 = vlaneseq
        %v547 = vshrl.u32 %v546, 7
        %v548 = vsub.s32 %v464, %v547
        %v549 = vrot.slane %v380, %v548
        %v550 = vsel %vm469, %v549, %v545
        %v551 = vlaneseq
        %v552 = vshrl.u32 %v551, 7
        %v553 = vsub.s32 %v471, %v552
        %v554 = vrot.slane %v381, %v553
        %v555 = vsel %vm476, %v554, %v550
        %v556 = vlaneseq
        %v557 = vshrl.u32 %v556, 7
        %v558 = vsub.s32 %v424, %v557
        %v559 = vrot.slane %v382, %v558
        %v560 = vlaneseq
        %v561 = vshrl.u32 %v560, 7
        %v562 = vsub.s32 %v429, %v561
        %v563 = vrot.slane %v383, %v562
        %v564 = vsel %vm434, %v563, %v559
        %v565 = vlaneseq
        %v566 = vshrl.u32 %v565, 7
        %v567 = vsub.s32 %v436, %v566
        %v568 = vrot.slane %v384, %v567
        %v569 = vsel %vm441, %v568, %v564
        %v570 = vlaneseq
        %v571 = vshrl.u32 %v570, 7
        %v572 = vsub.s32 %v443, %v571
        %v573 = vrot.slane %v385, %v572
        %v574 = vsel %vm448, %v573, %v569
        %v575 = vlaneseq
        %v576 = vshrl.u32 %v575, 7
        %v577 = vsub.s32 %v450, %v576
        %v578 = vrot.slane %v386, %v577
        %v579 = vsel %vm455, %v578, %v574
        %v580 = vlaneseq
        %v581 = vshrl.u32 %v580, 7
        %v582 = vsub.s32 %v457, %v581
        %v583 = vrot.slane %v387, %v582
        %v584 = vsel %vm462, %v583, %v579
        %v585 = vlaneseq
        %v586 = vshrl.u32 %v585, 7
        %v587 = vsub.s32 %v464, %v586
        %v588 = vrot.slane %v388, %v587
        %v589 = vsel %vm469, %v588, %v584
        %v590 = vlaneseq
        %v591 = vshrl.u32 %v590, 7
        %v592 = vsub.s32 %v471, %v591
        %v593 = vrot.slane %v389, %v592
        %v594 = vsel %vm476, %v593, %v589
        %vm595 = vcmask 1041409
        %v596 = vsel %vm595, %v516, %v477
        %vm597 = vcmask 1042434
        %v598 = vsel %vm597, %v555, %v596
        %vm599 = vcmask 1043459
        %v600 = vsel %vm599, %v594, %v598
        %vm601 = vcmask 523264
        %v602 = vsel %vm601, %v600, 0
        %v605 = vsel %vm601, %v390, 0
        %607 = vmatprep.subr.mxu0 0.0
        %608 = vmatpush1.xpose.msra.mxu0 %v605
        %609 = vmatprep.subr.mxu0 0.0
        %610 = vmatpush1.xpose.msra.mxu0 0.0
        %611 = vmatprep.subr.mxu0 0.0
        %612 = vmatpush1.xpose.msra.mxu0 0.0
        %613 = vmatprep.subr.mxu0 0.0
        %614 = vmatpush1.xpose.msra.mxu0 0.0
        %615 = vmatprep.subr.mxu0 0.0
        %616 = vmatpush1.xpose.msra.mxu0 0.0
        %617 = vmatprep.subr.mxu0 0.0
        %618 = vmatpush1.xpose.msra.mxu0 0.0
        %619 = vmatprep.subr.mxu0 0.0
        %620 = vmatpush1.xpose.msra.mxu0 0.0
        %621 = vmatprep.subr.mxu0 0.0
        %622 = vmatpush1.xpose.msra.mxu0 0.0
        %623 = vmatprep.subr.mxu0 0.0
        %624 = vmatpush1.xpose.msra.mxu0 0.0
        %625 = vmatprep.subr.mxu0 0.0
        %626 = vmatpush1.xpose.msra.mxu0 0.0
        %627 = vmatprep.subr.mxu0 0.0
        %628 = vmatpush1.xpose.msra.mxu0 0.0
        %629 = vmatprep.subr.mxu0 0.0
        %630 = vmatpush1.xpose.msra.mxu0 0.0
        %631 = vmatprep.subr.mxu0 0.0
        %632 = vmatpush1.xpose.msra.mxu0 0.0
        %633 = vmatprep.subr.mxu0 0.0
        %634 = vmatpush1.xpose.msra.mxu0 0.0
        %635 = vmatprep.subr.mxu0 0.0
        %636 = vmatpush1.xpose.msra.mxu0 0.0
        %637 = vmatprep.subr.mxu0 0.0
        %638 = vmatpush1.xpose.msra.mxu0 0.0
        %639 = vmatprep.subr.mxu0 0.0
        %640 = vmatpush1.xpose.msra.mxu0 0.0
        %641 = vmatprep.subr.mxu0 0.0
        %642 = vmatpush1.xpose.msra.mxu0 0.0
        %643 = vmatprep.subr.mxu0 0.0
        %644 = vmatpush1.xpose.msra.mxu0 0.0
        %645 = vmatprep.subr.mxu0 0.0
        %646 = vmatpush1.xpose.msra.mxu0 0.0
        %647 = vmatprep.subr.mxu0 0.0
        %648 = vmatpush1.xpose.msra.mxu0 0.0
        %649 = vmatprep.subr.mxu0 0.0
        %650 = vmatpush1.xpose.msra.mxu0 0.0
        %651 = vmatprep.subr.mxu0 0.0
        %652 = vmatpush1.xpose.msra.mxu0 0.0
        %653 = vmatprep.subr.mxu0 0.0
        %654 = vmatpush1.xpose.msra.mxu0 0.0
        %655 = vmatprep.subr.mxu0 0.0
        %656 = vmatpush1.xpose.msra.mxu0 0.0
        %657 = vmatprep.subr.mxu0 0.0
        %658 = vmatpush1.xpose.msra.mxu0 0.0
        %659 = vmatprep.subr.mxu0 0.0
        %660 = vmatpush1.xpose.msra.mxu0 0.0
        %661 = vmatprep.subr.mxu0 0.0
        %662 = vmatpush1.xpose.msra.mxu0 0.0
        %663 = vmatprep.subr.mxu0 0.0
        %664 = vmatpush1.xpose.msra.mxu0 0.0
        %665 = vmatprep.subr.mxu0 0.0
        %666 = vmatpush1.xpose.msra.mxu0 0.0
        %667 = vmatprep.subr.mxu0 0.0
        %668 = vmatpush1.xpose.msra.mxu0 0.0
        %669 = vmatprep.subr.mxu0 0.0
        %670 = vmatpush1.xpose.msra.mxu0 0.0
        %671 = vmatprep.mubr.f32.mxu0 0.0
        %672 = vmatmul.mubr.f32.gmra.mrb[0].mxu0 %v602
        %v673 = vpop.f32.mrb[0].mxu0
        %v674 = vadd.f32 0.0, %v673
        %v675 = vpop.f32.mrb[0].mxu0
        %676 = vdwg.mxu0
        %v677 = vmax.f32 %v674, 0.0
        %v678 = vld [vmem:[%s3] sm:$0xff]
        %v679 = vld [vmem:[%s3 + $0x8] sm:$0xff]
        %v680 = vld [vmem:[%s3 + $0x10] sm:$0xff]
        %v681 = vld [vmem:[%s3 + $0x18] sm:$0xff]
        %v682 = vld [vmem:[%s3 + $0x20] sm:$0xff]
        %v683 = vld [vmem:[%s3 + $0x28] sm:$0xff]
        %v684 = vld [vmem:[%s3 + $0x30] sm:$0xff]
        %v685 = vld [vmem:[%s3 + $0x38] sm:$0xff]
        %vm686 = vcmask 31744
        %v688 = vsel %vm686, %v677, 0
        %v691 = vsel %vm686, %v678, 0
        %v694 = vsel %vm686, %v679, 0
        %v697 = vsel %vm686, %v680, 0
        %v700 = vsel %vm686, %v681, 0
        %v703 = vsel %vm686, %v682, 0
        %v706 = vsel %vm686, %v683, 0
        %v709 = vsel %vm686, %v684, 0
        %v712 = vsel %vm686, %v685, 0
        %714 = vmatprep.subr.mxu0 0.0
        %715 = vmatpush1.xpose.msra.mxu0 %v691
        %716 = vmatprep.subr.mxu0 0.0
        %717 = vmatpush1.xpose.msra.mxu0 %v694
        %718 = vmatprep.subr.mxu0 0.0
        %719 = vmatpush1.xpose.msra.mxu0 %v697
        %720 = vmatprep.subr.mxu0 0.0
        %721 = vmatpush1.xpose.msra.mxu0 %v700
        %722 = vmatprep.subr.mxu0 0.0
        %723 = vmatpush1.xpose.msra.mxu0 %v703
        %724 = vmatprep.subr.mxu0 0.0
        %725 = vmatpush1.xpose.msra.mxu0 %v706
        %726 = vmatprep.subr.mxu0 0.0
        %727 = vmatpush1.xpose.msra.mxu0 %v709
        %728 = vmatprep.subr.mxu0 0.0
        %729 = vmatpush1.xpose.msra.mxu0 %v712
        %730 = vmatprep.subr.mxu0 0.0
        %731 = vmatpush1.xpose.msra.mxu0 0.0
        %732 = vmatprep.subr.mxu0 0.0
        %733 = vmatpush1.xpose.msra.mxu0 0.0
        %734 = vmatprep.subr.mxu0 0.0
        %735 = vmatpush1.xpose.msra.mxu0 0.0
        %736 = vmatprep.subr.mxu0 0.0
        %737 = vmatpush1.xpose.msra.mxu0 0.0
        %738 = vmatprep.subr.mxu0 0.0
        %739 = vmatpush1.xpose.msra.mxu0 0.0
        %740 = vmatprep.subr.mxu0 0.0
        %741 = vmatpush1.xpose.msra.mxu0 0.0
        %742 = vmatprep.subr.mxu0 0.0
        %743 = vmatpush1.xpose.msra.mxu0 0.0
        %744 = vmatprep.subr.mxu0 0.0
        %745 = vmatpush1.xpose.msra.mxu0 0.0
        %746 = vmatprep.subr.mxu0 0.0
        %747 = vmatpush1.xpose.msra.mxu0 0.0
        %748 = vmatprep.subr.mxu0 0.0
        %749 = vmatpush1.xpose.msra.mxu0 0.0
        %750 = vmatprep.subr.mxu0 0.0
        %751 = vmatpush1.xpose.msra.mxu0 0.0
        %752 = vmatprep.subr.mxu0 0.0
        %753 = vmatpush1.xpose.msra.mxu0 0.0
        %754 = vmatprep.subr.mxu0 0.0
        %755 = vmatpush1.xpose.msra.mxu0 0.0
        %756 = vmatprep.subr.mxu0 0.0
        %757 = vmatpush1.xpose.msra.mxu0 0.0
        %758 = vmatprep.subr.mxu0 0.0
        %759 = vmatpush1.xpose.msra.mxu0 0.0
        %760 = vmatprep.subr.mxu0 0.0
        %761 = vmatpush1.xpose.msra.mxu0 0.0
        %762 = vmatprep.subr.mxu0 0.0
        %763 = vmatpush1.xpose.msra.mxu0 0.0
        %764 = vmatprep.subr.mxu0 0.0
        %765 = vmatpush1.xpose.msra.mxu0 0.0
        %766 = vmatprep.subr.mxu0 0.0
        %767 = vmatpush1.xpose.msra.mxu0 0.0
        %768 = vmatprep.subr.mxu0 0.0
        %769 = vmatpush1.xpose.msra.mxu0 0.0
        %770 = vmatprep.subr.mxu0 0.0
        %771 = vmatpush1.xpose.msra.mxu0 0.0
        %772 = vmatprep.subr.mxu0 0.0
        %773 = vmatpush1.xpose.msra.mxu0 0.0
        %774 = vmatprep.subr.mxu0 0.0
        %775 = vmatpush1.xpose.msra.mxu0 0.0
        %776 = vmatprep.subr.mxu0 0.0
        %777 = vmatpush1.xpose.msra.mxu0 0.0
        %778 = vmatprep.mubr.f32.mxu0 0.0
        %779 = vmatmul.mubr.f32.gmra.mrb[0].mxu0 %v688
        %v780 = vpop.f32.mrb[0].mxu0
        %v781 = vadd.f32 0.0, %v780
        %v782 = vpop.f32.mrb[0].mxu0
        %783 = vdwg.mxu0
        %v784 = vxor.u32 %v781, 2147483648
        %v785 = vmul.f32 %v784, 1.442695
        %v786 = vpow.pop %v785
        %v787 = vadd.f32 %v786, 1.0
        %v788 = vrcp.pop %v787
        %v789 = vmul.f32 1.0, %v788
        %v790 = vlaneseq
        %v791 = vshrl.u32 %v790, 7
        %v792 = vsub.s32 0, %v791
        %v793 = vrot.slane %v789, %v792
        %795 = vbcast.lane.b32.xlu0 %v793, 256
        %v796 = vpop.permute.xlu0 %795
        %s798 = sor.u32 256, 8
        %799 = vbcast.lane.b32.xlu0 %v793, %s798
        %v800 = vpop.permute.xlu0 %799
        %s802 = sor.u32 256, 16
        %803 = vbcast.lane.b32.xlu0 %v793, %s802
        %v804 = vpop.permute.xlu0 %803
        %s806 = sor.u32 256, 24
        %807 = vbcast.lane.b32.xlu0 %v793, %s806
        %v808 = vpop.permute.xlu0 %807
        %s810 = sor.u32 256, 32
        %811 = vbcast.lane.b32.xlu0 %v793, %s810
        %v812 = vpop.permute.xlu0 %811
        %s814 = sor.u32 256, 40
        %815 = vbcast.lane.b32.xlu0 %v793, %s814
        %v816 = vpop.permute.xlu0 %815
        %s818 = sor.u32 256, 48
        %819 = vbcast.lane.b32.xlu0 %v793, %s818
        %v820 = vpop.permute.xlu0 %819
        %s822 = sor.u32 256, 56
        %823 = vbcast.lane.b32.xlu0 %v793, %s822
        %v824 = vpop.permute.xlu0 %823
        %v825 = vlaneseq
        %v826 = vshrl.u32 %v825, 7
        %v827 = vsub.s32 1, %v826
        %v828 = vrot.slane %v789, %v827
        %830 = vbcast.lane.b32.xlu0 %v828, 256
        %v831 = vpop.permute.xlu0 %830
        %s833 = sor.u32 256, 8
        %834 = vbcast.lane.b32.xlu0 %v828, %s833
        %v835 = vpop.permute.xlu0 %834
        %s837 = sor.u32 256, 16
        %838 = vbcast.lane.b32.xlu0 %v828, %s837
        %v839 = vpop.permute.xlu0 %838
        %s841 = sor.u32 256, 24
        %842 = vbcast.lane.b32.xlu0 %v828, %s841
        %v843 = vpop.permute.xlu0 %842
        %s845 = sor.u32 256, 32
        %846 = vbcast.lane.b32.xlu0 %v828, %s845
        %v847 = vpop.permute.xlu0 %846
        %s849 = sor.u32 256, 40
        %850 = vbcast.lane.b32.xlu0 %v828, %s849
        %v851 = vpop.permute.xlu0 %850
        %s853 = sor.u32 256, 48
        %854 = vbcast.lane.b32.xlu0 %v828, %s853
        %v855 = vpop.permute.xlu0 %854
        %s857 = sor.u32 256, 56
        %858 = vbcast.lane.b32.xlu0 %v828, %s857
        %v859 = vpop.permute.xlu0 %858
        %v860 = vlaneseq
        %v861 = vshrl.u32 %v860, 7
        %v862 = vsub.s32 2, %v861
        %v863 = vrot.slane %v789, %v862
        %865 = vbcast.lane.b32.xlu0 %v863, 256
        %v866 = vpop.permute.xlu0 %865
        %s868 = sor.u32 256, 8
        %869 = vbcast.lane.b32.xlu0 %v863, %s868
        %v870 = vpop.permute.xlu0 %869
        %s872 = sor.u32 256, 16
        %873 = vbcast.lane.b32.xlu0 %v863, %s872
        %v874 = vpop.permute.xlu0 %873
        %s876 = sor.u32 256, 24
        %877 = vbcast.lane.b32.xlu0 %v863, %s876
        %v878 = vpop.permute.xlu0 %877
        %s880 = sor.u32 256, 32
        %881 = vbcast.lane.b32.xlu0 %v863, %s880
        %v882 = vpop.permute.xlu0 %881
        %s884 = sor.u32 256, 40
        %885 = vbcast.lane.b32.xlu0 %v863, %s884
        %v886 = vpop.permute.xlu0 %885
        %s888 = sor.u32 256, 48
        %889 = vbcast.lane.b32.xlu0 %v863, %s888
        %v890 = vpop.permute.xlu0 %889
        %s892 = sor.u32 256, 56
        %893 = vbcast.lane.b32.xlu0 %v863, %s892
        %v894 = vpop.permute.xlu0 %893
        %v895 = vlaneseq
        %v896 = vshrl.u32 %v895, 7
        %v897 = vsub.s32 3, %v896
        %v898 = vrot.slane %v789, %v897
        %900 = vbcast.lane.b32.xlu0 %v898, 256
        %v901 = vpop.permute.xlu0 %900
        %s903 = sor.u32 256, 8
        %904 = vbcast.lane.b32.xlu0 %v898, %s903
        %v905 = vpop.permute.xlu0 %904
        %s907 = sor.u32 256, 16
        %908 = vbcast.lane.b32.xlu0 %v898, %s907
        %v909 = vpop.permute.xlu0 %908
        %s911 = sor.u32 256, 24
        %912 = vbcast.lane.b32.xlu0 %v898, %s911
        %v913 = vpop.permute.xlu0 %912
        %s915 = sor.u32 256, 32
        %916 = vbcast.lane.b32.xlu0 %v898, %s915
        %v917 = vpop.permute.xlu0 %916
        %s919 = sor.u32 256, 40
        %920 = vbcast.lane.b32.xlu0 %v898, %s919
        %v921 = vpop.permute.xlu0 %920
        %s923 = sor.u32 256, 48
        %924 = vbcast.lane.b32.xlu0 %v898, %s923
        %v925 = vpop.permute.xlu0 %924
        %s927 = sor.u32 256, 56
        %928 = vbcast.lane.b32.xlu0 %v898, %s927
        %v929 = vpop.permute.xlu0 %928
        %v930 = vmul.f32 %v261, %v796
        %v931 = vmul.f32 %v262, %v800
        %v932 = vmul.f32 %v263, %v804
        %v933 = vmul.f32 %v264, %v808
        %v934 = vmul.f32 %v265, %v812
        %v935 = vmul.f32 %v266, %v816
        %v936 = vmul.f32 %v267, %v820
        %v937 = vmul.f32 %v268, %v824
        %v938 = vmul.f32 %v269, %v831
        %v939 = vmul.f32 %v270, %v835
        %v940 = vmul.f32 %v271, %v839
        %v941 = vmul.f32 %v272, %v843
        %v942 = vmul.f32 %v273, %v847
        %v943 = vmul.f32 %v274, %v851
        %v944 = vmul.f32 %v275, %v855
        %v945 = vmul.f32 %v276, %v859
        %v946 = vmul.f32 %v277, %v866
        %v947 = vmul.f32 %v278, %v870
        %v948 = vmul.f32 %v279, %v874
        %v949 = vmul.f32 %v280, %v878
        %v950 = vmul.f32 %v281, %v882
        %v951 = vmul.f32 %v282, %v886
        %v952 = vmul.f32 %v283, %v890
        %v953 = vmul.f32 %v284, %v894
        %v954 = vmul.f32 %v285, %v901
        %v955 = vmul.f32 %v286, %v905
        %v956 = vmul.f32 %v287, %v909
        %v957 = vmul.f32 %v288, %v913
        %v958 = vmul.f32 %v289, %v917
        %v959 = vmul.f32 %v290, %v921
        %v960 = vmul.f32 %v291, %v925
        %v961 = vmul.f32 %v292, %v929
        %v962 = vld [vmem:[%s228] sm:$0xff]
        %v963 = vld [vmem:[%s228 + $0x8] sm:$0xff]
        %v964 = vld [vmem:[%s228 + $0x10] sm:$0xff]
        %v965 = vld [vmem:[%s228 + $0x18] sm:$0xff]
        %v966 = vld [vmem:[%s228 + $0x20] sm:$0xff]
        %v967 = vld [vmem:[%s228 + $0x28] sm:$0xff]
        %v968 = vld [vmem:[%s228 + $0x30] sm:$0xff]
        %v969 = vld [vmem:[%s228 + $0x38] sm:$0xff]
        %v970 = vld [vmem:[%s228 + $0x40] sm:$0xff]
        %v971 = vld [vmem:[%s228 + $0x48] sm:$0xff]
        %v972 = vld [vmem:[%s228 + $0x50] sm:$0xff]
        %v973 = vld [vmem:[%s228 + $0x58] sm:$0xff]
        %v974 = vld [vmem:[%s228 + $0x60] sm:$0xff]
        %v975 = vld [vmem:[%s228 + $0x68] sm:$0xff]
        %v976 = vld [vmem:[%s228 + $0x70] sm:$0xff]
        %v977 = vld [vmem:[%s228 + $0x78] sm:$0xff]
        %v978 = vld [vmem:[%s228 + $0x80] sm:$0xff]
        %v979 = vld [vmem:[%s228 + $0x88] sm:$0xff]
        %v980 = vld [vmem:[%s228 + $0x90] sm:$0xff]
        %v981 = vld [vmem:[%s228 + $0x98] sm:$0xff]
        %v982 = vld [vmem:[%s228 + $0xa0] sm:$0xff]
        %v983 = vld [vmem:[%s228 + $0xa8] sm:$0xff]
        %v984 = vld [vmem:[%s228 + $0xb0] sm:$0xff]
        %v985 = vld [vmem:[%s228 + $0xb8] sm:$0xff]
        %v986 = vld [vmem:[%s228 + $0xc0] sm:$0xff]
        %v987 = vld [vmem:[%s228 + $0xc8] sm:$0xff]
        %v988 = vld [vmem:[%s228 + $0xd0] sm:$0xff]
        %v989 = vld [vmem:[%s228 + $0xd8] sm:$0xff]
        %v990 = vld [vmem:[%s228 + $0xe0] sm:$0xff]
        %v991 = vld [vmem:[%s228 + $0xe8] sm:$0xff]
        %v992 = vld [vmem:[%s228 + $0xf0] sm:$0xff]
        %v993 = vld [vmem:[%s228 + $0xf8] sm:$0xff]
        %v994 = vadd.f32 %v930, %v962
        %v995 = vadd.f32 %v931, %v963
        %v996 = vadd.f32 %v932, %v964
        %v997 = vadd.f32 %v933, %v965
        %v998 = vadd.f32 %v934, %v966
        %v999 = vadd.f32 %v935, %v967
        %v1000 = vadd.f32 %v936, %v968
        %v1001 = vadd.f32 %v937, %v969
        %v1002 = vadd.f32 %v938, %v970
        %v1003 = vadd.f32 %v939, %v971
        %v1004 = vadd.f32 %v940, %v972
        %v1005 = vadd.f32 %v941, %v973
        %v1006 = vadd.f32 %v942, %v974
        %v1007 = vadd.f32 %v943, %v975
        %v1008 = vadd.f32 %v944, %v976
        %v1009 = vadd.f32 %v945, %v977
        %v1010 = vadd.f32 %v946, %v978
        %v1011 = vadd.f32 %v947, %v979
        %v1012 = vadd.f32 %v948, %v980
        %v1013 = vadd.f32 %v949, %v981
        %v1014 = vadd.f32 %v950, %v982
        %v1015 = vadd.f32 %v951, %v983
        %v1016 = vadd.f32 %v952, %v984
        %v1017 = vadd.f32 %v953, %v985
        %v1018 = vadd.f32 %v954, %v986
        %v1019 = vadd.f32 %v955, %v987
        %v1020 = vadd.f32 %v956, %v988
        %v1021 = vadd.f32 %v957, %v989
        %v1022 = vadd.f32 %v958, %v990
        %v1023 = vadd.f32 %v959, %v991
        %v1024 = vadd.f32 %v960, %v992
        %v1025 = vadd.f32 %v961, %v993
        %1026 = vst [vmem:[%s257] sm:$0xff] %v994
        %1027 = vst [vmem:[%s257 + $0x8] sm:$0xff] %v995
        %1028 = vst [vmem:[%s257 + $0x10] sm:$0xff] %v996
        %1029 = vst [vmem:[%s257 + $0x18] sm:$0xff] %v997
        %1030 = vst [vmem:[%s257 + $0x20] sm:$0xff] %v998
        %1031 = vst [vmem:[%s257 + $0x28] sm:$0xff] %v999
        %1032 = vst [vmem:[%s257 + $0x30] sm:$0xff] %v1000
        %1033 = vst [vmem:[%s257 + $0x38] sm:$0xff] %v1001
        %1034 = vst [vmem:[%s257 + $0x40] sm:$0xff] %v1002
        %1035 = vst [vmem:[%s257 + $0x48] sm:$0xff] %v1003
        %1036 = vst [vmem:[%s257 + $0x50] sm:$0xff] %v1004
        %1037 = vst [vmem:[%s257 + $0x58] sm:$0xff] %v1005
        %1038 = vst [vmem:[%s257 + $0x60] sm:$0xff] %v1006
        %1039 = vst [vmem:[%s257 + $0x68] sm:$0xff] %v1007
        %1040 = vst [vmem:[%s257 + $0x70] sm:$0xff] %v1008
        %1041 = vst [vmem:[%s257 + $0x78] sm:$0xff] %v1009
        %1042 = vst [vmem:[%s257 + $0x80] sm:$0xff] %v1010
        %1043 = vst [vmem:[%s257 + $0x88] sm:$0xff] %v1011
        %1044 = vst [vmem:[%s257 + $0x90] sm:$0xff] %v1012
        %1045 = vst [vmem:[%s257 + $0x98] sm:$0xff] %v1013
        %1046 = vst [vmem:[%s257 + $0xa0] sm:$0xff] %v1014
        %1047 = vst [vmem:[%s257 + $0xa8] sm:$0xff] %v1015
        %1048 = vst [vmem:[%s257 + $0xb0] sm:$0xff] %v1016
        %1049 = vst [vmem:[%s257 + $0xb8] sm:$0xff] %v1017
        %1050 = vst [vmem:[%s257 + $0xc0] sm:$0xff] %v1018
        %1051 = vst [vmem:[%s257 + $0xc8] sm:$0xff] %v1019
        %1052 = vst [vmem:[%s257 + $0xd0] sm:$0xff] %v1020
        %1053 = vst [vmem:[%s257 + $0xd8] sm:$0xff] %v1021
        %1054 = vst [vmem:[%s257 + $0xe0] sm:$0xff] %v1022
        %1055 = vst [vmem:[%s257 + $0xe8] sm:$0xff] %v1023
        %1056 = vst [vmem:[%s257 + $0xf0] sm:$0xff] %v1024
        %1057 = vst [vmem:[%s257 + $0xf8] sm:$0xff] %v1025
        %s1058 = sand.u32 %s126, 1
        %s1059 = scalar_lea.sflag [#allocation4], %s1058
        %s1060 = sand.u32 %s126, 1
        %s1061 = smul.addr %s1060, 256
        %s1062 = scalar_lea.vmem [#allocation7], %s1061
        // Predicated region
        $region45: #{tpu_custom_call.1} parent=35 // pred_check
          %p1063 = pneg %p136
        $region46: #{tpu_custom_call.1} parent=35 // pred_check_branch
          %1065 = sbr.rel (%p1063) target = $region48
        $region47: #{tpu_custom_call.1} parent=35 // pred_region
          %s1066 = smul.u32 4, %s24
          %s1068 = ssub.s32 4096, 4096
          %1069 = vsyncadd %s1059, %s1068
          %s1070 = smul.addr %s1066, 8
          %s1071 = smul.addr %s1070, 128
          %s1072 = scalar_lea.hbm %s4, %s1071
          %s1073 = sshll.u32 %s1062, 4
          %s1074 = int_to_ptr.vmem [resolvable:$true] %s1073
          %1079 = dma.vmem_to_hbm [thread:$0]  %s1074, 4096, %s1072, %s1059, 128, 128, 8
        $region48: #{tpu_custom_call.1} parent=35 // pred_fallthru
          _
      $region36: #{tpu_custom_call.1} parent=5 // pred_fallthru
        _
      %p1080 = scmp.le.s32.totalorder 2, %s19
      // Predicated region
      $region49: #{tpu_custom_call.1} parent=5 // pred_check
        %p1081 = pneg %p1080
      $region50: #{tpu_custom_call.1} parent=5 // pred_check_branch
        %1083 = sbr.rel (%p1081) target = $region52
      $region51: #{tpu_custom_call.1} parent=5 // pred_region
        %s1084 = ssub.s32 %s19, 2
        // Predicated region
        $region53: #{tpu_custom_call.1} parent=51 // pred_check
          %p1085 = pneg %p142
        $region54: #{tpu_custom_call.1} parent=51 // pred_check_branch
          %1087 = sbr.rel (%p1085) target = $region56
        $region55: #{tpu_custom_call.1} parent=51 // pred_region
          %s1088 = sand.u32 %s127, 1
          %s1089 = scalar_lea.sflag [#allocation4], %s1088
          %s1090 = sand.u32 %s127, 1
          %s1091 = smul.addr %s1090, 256
          %s1092 = scalar_lea.vmem [#allocation7], %s1091
          %1093 = dma.done %s1089, 4096
        $region56: #{tpu_custom_call.1} parent=51 // pred_fallthru
          _
      $region52: #{tpu_custom_call.1} parent=5 // pred_fallthru
        _
    $region6: #{tpu_custom_call.1} parent=1 // loop_footer
      %s23 = sadd.s32 1, %s19
    $region7: #{tpu_custom_call.1} parent=1 // loop_footer_branch
      %18 = sbr.rel target = $region3
    $region8: #{tpu_custom_call.1} parent=1 // loop_exit
      _
    %1094 = vsyncpa [#allocation3], 1
    %s1095 = scalar_lea.sflag [#allocation3], 1
    %1096 = vsyncpa %s1095, 1
    %1097 = vsyncpa [#allocation6], 1
    %s1098 = scalar_lea.sflag [#allocation6], 1
    %1099 = vsyncpa %s1098, 1
    %1100 = vsyncpa [#allocation4], 1
    %s1101 = scalar_lea.sflag [#allocation4], 1
    %1102 = vsyncpa %s1101, 1

</llo_original>
